<compile_context>
chip_gen: v5e
topology: v5e:2x2
jax: 0.10.0
libtpu: 0.0.40
codegen_flags: <defaults>
</compile_context>

<pallas_src>
import math
from functools import partial

import jax
import jax.numpy as jnp
from jax.experimental import pallas as pl
from jax.experimental.pallas import tpu as pltpu
import numpy as np


# ----------------------------------------------------------------------------
# Synthetic "reference tree" (deterministic, in-script; no checkpoint loading)
# ----------------------------------------------------------------------------
class _Gate:
    def __init__(self, dim1, dim2, low1, upp1, low2, upp2):
        self.gate_dim1 = dim1
        self.gate_dim2 = dim2
        self.gate_low1 = low1
        self.gate_upp1 = upp1
        self.gate_low2 = low2
        self.gate_upp2 = upp2


class _Tree:
    def __init__(self, gate):
        self.gate = gate


def _log_odds_ratio(p):
    """log(p / (1 - p)) with the same clamping as the PyTorch module."""
    if p < 1e-10:
        return -10.0
    if p > 1.0 - 1e-10:
        return 10.0
    return math.log(p / (1.0 - p))


def _expanded_square_gate(tree):
    """Mirror SquareModelNode.get_expanded_beyond_range_square_gate."""
    low1, upp1 = tree.gate.gate_low1, tree.gate.gate_upp1
    low2, upp2 = tree.gate.gate_low2, tree.gate.gate_upp2
    x_len = upp1 - low1
    y_len = upp2 - low2
    x_is_bigger = x_len > y_len
    side = x_len if x_is_bigger else y_len
    if x_is_bigger:
        if low2 == 0.0:
            s_upp2, s_low2 = upp2, upp2 - side
        else:
            s_low2, s_upp2 = low2, low2 + side
        s_low1, s_upp1 = low1, upp1
    else:
        if low1 == 0.0:
            s_upp1, s_low1 = upp1, upp1 - side
        else:
            s_low1, s_upp1 = low1, low1 + side
        s_low2, s_upp2 = low2, upp2
    return s_low1, s_upp1, s_low2, s_upp2


# ----------------------------------------------------------------------------
# Pallas kernel: per-cell soft-gate log-probability
# ----------------------------------------------------------------------------
_LANE = 128
_EXP_CLAMP = 80.0  # exp(80) ~ 5.5e34 < f32 max; keeps the paired form stable.


def _gate_logp_kernel(scalars_ref, x_ref, out_ref):
    # scalars_ref (SMEM, (8,)): [k*low1, k*upp1, k*low2, k*upp2, k, C1, C2, pad]
    # with C_i = exp(-k*(upp_i - low_i)).
    klow1 = scalars_ref[0]
    kupp1 = scalars_ref[1]
    klow2 = scalars_ref[2]
    kupp2 = scalars_ref[3]
    k = scalars_ref[4]
    c1 = scalars_ref[5]
    c2 = scalars_ref[6]

    # x_ref: (2, tile_r, 128) -- feature slabs; out_ref: (tile_r, 128)
    kx1 = k * x_ref[0]
    kx2 = k * x_ref[1]

    # logsig(a) + logsig(b) = -log1p(e^-a + e^-b + e^-(a+b)),  a+b = k*(upp-low)
    # a = kx - k*low  ->  -a = klow - kx ;  b = k*upp - kx  ->  -b = kx - kupp
    t1 = (jnp.exp(jnp.minimum(klow1 - kx1, _EXP_CLAMP))
          + jnp.exp(jnp.minimum(kx1 - kupp1, _EXP_CLAMP)))
    t2 = (jnp.exp(jnp.minimum(klow2 - kx2, _EXP_CLAMP))
          + jnp.exp(jnp.minimum(kx2 - kupp2, _EXP_CLAMP)))

    out_ref[...] = -(jnp.log1p(t1 + c1) + jnp.log1p(t2 + c2))


def _gate_logp_pallas(x_slab, scalars, *, tile_r):
    """x_slab: (2, R, 128) f32, scalars: (8,) f32 -> logp slab (R, 128) f32."""
    _, rows, lanes = x_slab.shape
    assert lanes == _LANE and rows % tile_r == 0 and tile_r % 8 == 0
    grid = (rows // tile_r,)

    return pl.pallas_call(
        _gate_logp_kernel,
        out_shape=jax.ShapeDtypeStruct((rows, _LANE), jnp.float32),
        grid=grid,
        in_specs=[
            pl.BlockSpec(memory_space=pltpu.MemorySpace.SMEM),
            pl.BlockSpec((2, tile_r, _LANE), lambda i: (0, i, 0)),
        ],
        out_specs=pl.BlockSpec((tile_r, _LANE), lambda i: (i, 0)),
        compiler_params=pltpu.CompilerParams(
            dimension_semantics=("parallel",)
        ),
    )(scalars, x_slab)


def _round_up(a, b):
    return -(-a // b) * b


def _pick_tile_r(rows):
    # Multiple of 8 (sublane tile); cap block at ~1 MiB/feature (tile_r=2048);
    # prefer >= 2 grid steps when there is enough work (megacore on v7x).
    half = _round_up(-(-rows // 2), 8)
    return max(8, min(2048, half))


# ----------------------------------------------------------------------------
# SquareModelNode forward (JAX wrapper around the Pallas hot path)
# ----------------------------------------------------------------------------
class SquareModelNodeJAX:
    def __init__(self, logistic_k, reference_tree, init_tree=None,
                 gate_size_default=(1.0 / 4, 1.0 / 4)):
        self.logistic_k = float(logistic_k)
        self.reference_tree = reference_tree
        self.gate_dim1 = reference_tree.gate.gate_dim1
        self.gate_dim2 = reference_tree.gate.gate_dim2
        self.gate_size_default = gate_size_default
        src = reference_tree if init_tree is None else init_tree
        self.init_tree = src

        s_low1, s_upp1, s_low2, s_upp2 = _expanded_square_gate(src)
        c1 = s_low1 + (s_upp1 - s_low1) / 2.0
        c2 = s_low2 + (s_upp2 - s_low2) / 2.0
        s1 = s_upp1 - s_low1
        s2 = s_upp2 - s_low2
        assert np.round(s1 * 1e4) / 1e4 == np.round(s2 * 1e4) / 1e4

        # parameters, shape (1,) to match the torch nn.Parameter tensors
        self.center1_param = jnp.array([_log_odds_ratio(c1)], dtype=jnp.float32)
        self.center2_param = jnp.array([_log_odds_ratio(c2)], dtype=jnp.float32)
        self.side_length_param = jnp.array([_log_odds_ratio(s1)], dtype=jnp.float32)

        # TODO(synk): the PyTorch register_hook NaN-gradient guards are
        # autograd-time machinery with no forward-pass equivalent.

    def forward(self, x):
        # x: (n_cell, n_features) float32
        n = x.shape[0]
        sig = jax.nn.sigmoid
        c1 = sig(self.center1_param)            # (1,)
        c2 = sig(self.center2_param)            # (1,)
        side = sig(self.side_length_param)      # (1,)
        gate_upp1 = c1 + side / 2.0
        gate_low1 = c1 - side / 2.0
        gate_upp2 = c2 + side / 2.0
        gate_low2 = c2 - side / 2.0

        # --- per-cell log-probability: Pallas kernel ---
        k = jnp.float32(self.logistic_k)
        klow1 = k * gate_low1
        kupp1 = k * gate_upp1
        klow2 = k * gate_low2
        kupp2 = k * gate_upp2
        scalars = jnp.concatenate(
            [klow1, kupp1, klow2, kupp2,
             jnp.array([self.logistic_k], jnp.float32),
             jnp.exp(-(kupp1 - klow1)),          # C1
             jnp.exp(-(kupp2 - klow2)),          # C2
             jnp.zeros((1,), jnp.float32)]
        )                                        # (8,) SMEM payload

        # Column gather + lane-dense reshape.  NOTE: if x / gate dims are reused
        # across training steps this slab should be hoisted out of the step.
        cols = jnp.stack(
            [x[:, self.gate_dim1], x[:, self.gate_dim2]], axis=0
        ).astype(jnp.float32)                    # (2, N)

        rows = -(-n // _LANE)                    # ceil(N / 128)
        tile_r = _pick_tile_r(rows)
        num_tiles = -(-rows // tile_r)
        rows_pad = num_tiles * tile_r
        n_pad = rows_pad * _LANE
        if n_pad != n:
            cols = jnp.pad(cols, ((0, 0), (0, n_pad - n)))
        x_slab = cols.reshape(2, rows_pad, _LANE)

        logp_slab = _gate_logp_pallas(x_slab, scalars, tile_r=tile_r)
        logp = logp_slab.reshape(-1)[:n]         # (N,)

        # --- scalar regularization penalties (glue, plain JAX) ---
        rg = self.reference_tree.gate
        ref_reg_penalty = (
            (gate_low1 - rg.gate_low1) ** 2 + (gate_low2 - rg.gate_low2) ** 2
            + (gate_upp1 - rg.gate_upp1) ** 2 + (gate_upp2 - rg.gate_upp2) ** 2
        )
        ig = self.init_tree.gate
        init_reg_penalty = (
            (gate_low1 - ig.gate_low1) ** 2 + (gate_low2 - ig.gate_low2) ** 2
            + (gate_upp1 - ig.gate_upp1) ** 2 + (gate_upp2 - ig.gate_upp2) ** 2
        )
        size_reg_penalty = (
            (jnp.abs(gate_upp1 - gate_low1) - self.gate_size_default[0]) ** 2
            + (jnp.abs(gate_upp2 - gate_low2) - self.gate_size_default[1]) ** 2
        )
        corner_reg_penalty = jnp.sqrt(jnp.min(jnp.stack(
            [gate_low1 ** 2 + gate_low2 ** 2,
             gate_low1 ** 2 + (1.0 - gate_upp2) ** 2,
             (1.0 - gate_upp1) ** 2 + gate_low2 ** 2,
             (1.0 - gate_upp1) ** 2 + (1.0 - gate_upp2) ** 2], axis=0)))

        return (logp, ref_reg_penalty, init_reg_penalty,
                size_reg_penalty, corner_reg_penalty)


# ----------------------------------------------------------------------------
# main
# ----------------------------------------------------------------------------
if __name__ == "__main__":
    # synthetic reference tree: gate over features 0 and 1
    ref_tree = _Tree(_Gate(dim1=0, dim2=1,
                           low1=0.2, upp1=0.5, low2=0.3, upp2=0.55))
    node = SquareModelNodeJAX(logistic_k=10.0, reference_tree=ref_tree)

    # n_cell deliberately NOT a multiple of 128/1024 to exercise the padding path
    n_cell, n_feat = 1000, 8
    key = jax.random.PRNGKey(0)
    x = jax.random.uniform(key, (n_cell, n_feat), dtype=jnp.float32)

    logp, ref_pen, init_pen, size_pen, corner_pen = node.forward(x)
    jax.block_until_ready((logp, ref_pen, init_pen, size_pen, corner_pen))

    # sanity check against a pure-JAX reference of the per-cell hot path
    sig = jax.nn.sigmoid
    c1 = sig(node.center1_param); c2 = sig(node.center2_param)
    side = sig(node.side_length_param)
    gl1, gu1 = c1 - side / 2, c1 + side / 2
    gl2, gu2 = c2 - side / 2, c2 + side / 2
    k = node.logistic_k
    ls = jax.nn.log_sigmoid
    logp_ref = (ls(k * (x[:, 0] - gl1)) + ls(-k * (x[:, 0] - gu1))
                + ls(k * (x[:, 1] - gl2)) + ls(-k * (x[:, 1] - gu2)))
    assert logp.shape == (n_cell,)
    assert jnp.allclose(logp, logp_ref, atol=1e-4, rtol=1e-5)

    print("KERNEL_OK")
</pallas_src>

<mosaic_0001>
module attributes {stable_mosaic.version = 11 : i64} {
  func.func @_gate_logp_kernel(%arg0: i32, %arg1: memref<8xf32, #tpu.memory_space<smem>>, %arg2: memref<2x8x128xf32, #tpu.memory_space<vmem>>, %arg3: memref<8x128xf32, #tpu.memory_space<vmem>>) attributes {dimension_semantics = [#tpu.dimension_semantics<parallel>], iteration_bounds = array<i64: 1>, scalar_prefetch = 0 : i64, scratch_operands = 0 : i64, tpu.core_type = #tpu.core_type<tc>, window_params = [{transform_indices = @transform_0, window_bounds = array<i64: 8>}, {transform_indices = @transform_1, window_bounds = array<i64: 2, 8, 128>}, {transform_indices = @transform_2, window_bounds = array<i64: 8, 128>}]} {
    %c0 = arith.constant 0 : index
    %0 = memref.load %arg1[%c0] : memref<8xf32, #tpu.memory_space<smem>>
    %c1 = arith.constant 1 : index
    %1 = memref.load %arg1[%c1] : memref<8xf32, #tpu.memory_space<smem>>
    %c2 = arith.constant 2 : index
    %2 = memref.load %arg1[%c2] : memref<8xf32, #tpu.memory_space<smem>>
    %c3 = arith.constant 3 : index
    %3 = memref.load %arg1[%c3] : memref<8xf32, #tpu.memory_space<smem>>
    %c4 = arith.constant 4 : index
    %4 = memref.load %arg1[%c4] : memref<8xf32, #tpu.memory_space<smem>>
    %c5 = arith.constant 5 : index
    %5 = memref.load %arg1[%c5] : memref<8xf32, #tpu.memory_space<smem>>
    %c6 = arith.constant 6 : index
    %6 = memref.load %arg1[%c6] : memref<8xf32, #tpu.memory_space<smem>>
    %c0_0 = arith.constant 0 : index
    %c0_1 = arith.constant 0 : index
    %c0_2 = arith.constant 0 : index
    %7 = vector.load %arg2[%c0_0, %c0_1, %c0_2] : memref<2x8x128xf32, #tpu.memory_space<vmem>>, vector<1x8x128xf32>
    %8 = vector.shape_cast %7 : vector<1x8x128xf32> to vector<8x128xf32>
    %9 = vector.broadcast %4 : f32 to vector<8x128xf32>
    %10 = arith.mulf %9, %8 : vector<8x128xf32>
    %c1_3 = arith.constant 1 : index
    %c0_4 = arith.constant 0 : index
    %c0_5 = arith.constant 0 : index
    %11 = vector.load %arg2[%c1_3, %c0_4, %c0_5] : memref<2x8x128xf32, #tpu.memory_space<vmem>>, vector<1x8x128xf32>
    %12 = vector.shape_cast %11 : vector<1x8x128xf32> to vector<8x128xf32>
    %13 = vector.broadcast %4 : f32 to vector<8x128xf32>
    %14 = arith.mulf %13, %12 : vector<8x128xf32>
    %15 = vector.broadcast %0 : f32 to vector<8x128xf32>
    %16 = arith.subf %15, %10 : vector<8x128xf32>
    %cst = arith.constant 8.000000e+01 : f32
    %17 = vector.broadcast %cst : f32 to vector<8x128xf32>
    %18 = arith.minimumf %16, %17 : vector<8x128xf32>
    %19 = math.exp %18 : vector<8x128xf32>
    %20 = vector.broadcast %1 : f32 to vector<8x128xf32>
    %21 = arith.subf %10, %20 : vector<8x128xf32>
    %cst_6 = arith.constant 8.000000e+01 : f32
    %22 = vector.broadcast %cst_6 : f32 to vector<8x128xf32>
    %23 = arith.minimumf %21, %22 : vector<8x128xf32>
    %24 = math.exp %23 : vector<8x128xf32>
    %25 = arith.addf %19, %24 : vector<8x128xf32>
    %26 = vector.broadcast %2 : f32 to vector<8x128xf32>
    %27 = arith.subf %26, %14 : vector<8x128xf32>
    %cst_7 = arith.constant 8.000000e+01 : f32
    %28 = vector.broadcast %cst_7 : f32 to vector<8x128xf32>
    %29 = arith.minimumf %27, %28 : vector<8x128xf32>
    %30 = math.exp %29 : vector<8x128xf32>
    %31 = vector.broadcast %3 : f32 to vector<8x128xf32>
    %32 = arith.subf %14, %31 : vector<8x128xf32>
    %cst_8 = arith.constant 8.000000e+01 : f32
    %33 = vector.broadcast %cst_8 : f32 to vector<8x128xf32>
    %34 = arith.minimumf %32, %33 : vector<8x128xf32>
    %35 = math.exp %34 : vector<8x128xf32>
    %36 = arith.addf %30, %35 : vector<8x128xf32>
    %37 = vector.broadcast %5 : f32 to vector<8x128xf32>
    %38 = arith.addf %25, %37 : vector<8x128xf32>
    %39 = math.log1p %38 : vector<8x128xf32>
    %40 = vector.broadcast %6 : f32 to vector<8x128xf32>
    %41 = arith.addf %36, %40 : vector<8x128xf32>
    %42 = math.log1p %41 : vector<8x128xf32>
    %43 = arith.addf %39, %42 : vector<8x128xf32>
    %cst_9 = arith.constant 0.000000e+00 : f32
    %44 = vector.broadcast %cst_9 : f32 to vector<8x128xf32>
    %45 = arith.subf %44, %43 : vector<8x128xf32>
    %c0_10 = arith.constant 0 : index
    %c0_11 = arith.constant 0 : index
    %46 = vector.load %arg3[%c0_10, %c0_11] : memref<8x128xf32, #tpu.memory_space<vmem>>, vector<8x128xf32>
    tpu.vector_store %arg3[%c0_10, %c0_11], %45 {strides = array<i32>} : memref<8x128xf32, #tpu.memory_space<vmem>>, vector<8x128xf32>,
    return
  }
  func.func @transform_0(%arg0: i32) -> i32 {
    %c0_i32 = arith.constant 0 : i32
    %c0_i32_0 = arith.constant 0 : i32
    return %c0_i32 : i32
  }
  func.func @transform_1(%arg0: i32) -> (i32, i32, i32) {
    %c0_i32 = arith.constant 0 : i32
    %c0_i32_0 = arith.constant 0 : i32
    %c0_i32_1 = arith.constant 0 : i32
    return %c0_i32, %arg0, %c0_i32_0 : i32, i32, i32
  }
  func.func @transform_2(%arg0: i32) -> (i32, i32) {
    %c0_i32 = arith.constant 0 : i32
    %c0_i32_0 = arith.constant 0 : i32
    return %arg0, %c0_i32 : i32, i32
  }
}

</mosaic_0001>

<llo_original>
// kernel: tpu_custom_call.1
$region0: #{tpu_custom_call.1}
  #allocation0 [shape = 'u32[]', space=smem, size = 0x4, offset = 0x4, fixed_abs, tag = 'smem constant byte address 0x4 - core index']
  #allocation1 [shape = 'u32[72,128]{1,0:T(1,128)}', space=vmem, size = 0x9000, scoped, tag = 'internal scratch']
  %s0 = inlined_call_operand.hbm [shape: f32[8], index: 0, kind: input, shape index: {}]
  %s1 = inlined_call_operand.hbm [shape: f32[2,8,128], index: 1, kind: input, shape index: {}]
  %s2 = inlined_call_operand.hbm [shape: f32[8,128], index: 2, kind: output, shape index: {}]
  %s3 = sld [smem:[#allocation0]]
  $region26: #{tpu_custom_call.1} parent=0
    _
  %s5 = ssub.s32 1, %s3
  %s6 = scalar_select 0, %s5, %s3
  $region1: #{tpu_custom_call.1} parent=0
    #allocation2 [shape = 'u8[512]{0}', space=smem, size = 0x200, scoped, tag = 'input window, operand 0, single buffered']
    #allocation3 [shape = 's32[1]{0}', space=sflag, size = 0x4, scoped, tag = 'scoped memory for tpu_custom_call.1']
    #allocation4 [shape = 's32[1]{0}', space=sflag, size = 0x4, scoped, tag = 'scoped memory for tpu_custom_call.1']
    #allocation5 [shape = 's32[1]{0}', space=sflag, size = 0x4, scoped, tag = 'scoped memory for tpu_custom_call.1']
    #allocation6 [shape = 'u8[8192]{0}', space=vmem, size = 0x2000, scoped, tag = 'input window, operand 1, single buffered']
    #allocation7 [shape = 'u8[4096]{0}', space=vmem, size = 0x1000, scoped, tag = 'output window, operand 0, single buffered']
    %7 = vsyncpa [#allocation5], 0
    %8 = vsyncpa [#allocation3], 0
    %9 = vsyncpa [#allocation4], 0
    // Predicated region
    $region2: #{tpu_custom_call.1} parent=1 // pred_check
      _
    $region3: #{tpu_custom_call.1} parent=1 // pred_check_branch
      %11 = sbr.rel (0) target = $region5
    $region4: #{tpu_custom_call.1} parent=1 // pred_region
      %13 = vsyncadd [#allocation5], 0
      %s15 = sshll.u32 %s0, 4
      %s16 = int_to_ptr.hbm [resolvable:$true] %s15
      %18 = dma.hbm_to_smem %s16, 16, [#allocation2], [#allocation5]
    $region5: #{tpu_custom_call.1} parent=1 // pred_fallthru
      _
    // Predicated region
    $region6: #{tpu_custom_call.1} parent=1 // pred_check
      _
    $region7: #{tpu_custom_call.1} parent=1 // pred_check_branch
      %20 = sbr.rel (0) target = $region9
    $region8: #{tpu_custom_call.1} parent=1 // pred_region
      %22 = vsyncadd [#allocation3], 0
      %s23 = sshll.u32 %s1, 4
      %s24 = int_to_ptr.hbm [resolvable:$true] %s23
      %s25 = sshll.u32 [#allocation6], 4
      %s26 = int_to_ptr.vmem [resolvable:$true] %s25
      %31 = dma.hbm_to_vmem [thread:$0]  %s24, 256, %s26, [#allocation3], 128, 128, 8
    $region9: #{tpu_custom_call.1} parent=1 // pred_fallthru
      _
    // Predicated region
    $region10: #{tpu_custom_call.1} parent=1 // pred_check
      _
    $region11: #{tpu_custom_call.1} parent=1 // pred_check_branch
      %33 = sbr.rel (0) target = $region13
    $region12: #{tpu_custom_call.1} parent=1 // pred_region
      %35 = dma.done [#allocation5], 16
    $region13: #{tpu_custom_call.1} parent=1 // pred_fallthru
      _
    // Predicated region
    $region14: #{tpu_custom_call.1} parent=1 // pred_check
      _
    $region15: #{tpu_custom_call.1} parent=1 // pred_check_branch
      %37 = sbr.rel (0) target = $region17
    $region16: #{tpu_custom_call.1} parent=1 // pred_region
      %39 = dma.done [#allocation3], 256
    $region17: #{tpu_custom_call.1} parent=1 // pred_fallthru
      _
    %40 = sfence
    %s41 = sld [smem:[#allocation2]]
    %s42 = sld [smem:[#allocation2 + $0x1]]
    %s43 = sld [smem:[#allocation2 + $0x2]]
    %s44 = sld [smem:[#allocation2 + $0x3]]
    %s45 = sld [smem:[#allocation2 + $0x4]]
    %s46 = sld [smem:[#allocation2 + $0x5]]
    %s47 = sld [smem:[#allocation2 + $0x6]]
    %v48 = vld [vmem:[#allocation6] sm:$0xff]
    %v49 = vstv %s45
    %v50 = vmul.f32 %v49, %v48
    %s51 = scalar_lea.vmem [#allocation6], 8
    %v52 = vld [vmem:[%s51] sm:$0xff]
    %v53 = vmul.f32 %v49, %v52
    %v54 = vstv %s41
    %v55 = vsub.f32 %v54, %v50
    %v56 = vmin.f32 %v55, 80.0
    %v57 = vmul.f32 %v56, 1.442695
    %v58 = vpow.pop %v57
    %v59 = vstv %s42
    %v60 = vsub.f32 %v50, %v59
    %v61 = vmin.f32 %v60, 80.0
    %v62 = vmul.f32 %v61, 1.442695
    %v63 = vpow.pop %v62
    %v64 = vadd.f32 %v58, %v63
    %v65 = vstv %s43
    %v66 = vsub.f32 %v65, %v53
    %v67 = vmin.f32 %v66, 80.0
    %v68 = vmul.f32 %v67, 1.442695
    %v69 = vpow.pop %v68
    %v70 = vstv %s44
    %v71 = vsub.f32 %v53, %v70
    %v72 = vmin.f32 %v71, 80.0
    %v73 = vmul.f32 %v72, 1.442695
    %v74 = vpow.pop %v73
    %v75 = vadd.f32 %v69, %v74
    %v76 = vstv %s46
    %v77 = vadd.f32 %v64, %v76
    %v78 = vadd.f32 %v77, 1.0
    %v79 = vlog2.pop %v78
    %v80 = vmul.f32 %v79, 0.6931472
    %v81 = vmul.f32 -0.5, %v77
    %v82 = vadd.f32 %v81, 1.0
    %v83 = vmul.f32 %v82, %v77
    %v84 = vand.u32 2147483647, %v77
    %vm85 = vcmp.lt.f32.partialorder %v84, 0.0004427343
    %v86 = vsel %vm85, %v83, %v80
    %v87 = vstv %s47
    %v88 = vadd.f32 %v75, %v87
    %v89 = vadd.f32 %v88, 1.0
    %v90 = vlog2.pop %v89
    %v91 = vmul.f32 %v90, 0.6931472
    %v92 = vmul.f32 -0.5, %v88
    %v93 = vadd.f32 %v92, 1.0
    %v94 = vmul.f32 %v93, %v88
    %v95 = vand.u32 2147483647, %v88
    %vm96 = vcmp.lt.f32.partialorder %v95, 0.0004427343
    %v97 = vsel %vm96, %v94, %v91
    %v98 = vadd.f32 %v86, %v97
    %v99 = vsub.f32 0.0, %v98
    %100 = vst [vmem:[#allocation7] sm:$0xff] %v99
    // Predicated region
    $region18: #{tpu_custom_call.1} parent=1 // pred_check
      _
    $region19: #{tpu_custom_call.1} parent=1 // pred_check_branch
      %102 = sbr.rel (0) target = $region21
    $region20: #{tpu_custom_call.1} parent=1 // pred_region
      %104 = vsyncadd [#allocation4], 0
      %s106 = sshll.u32 [#allocation7], 4
      %s107 = int_to_ptr.vmem [resolvable:$true] %s106
      %s108 = sshll.u32 %s2, 4
      %s109 = int_to_ptr.hbm [resolvable:$true] %s108
      %111 = dma.vmem_to_hbm [thread:$0]  %s107, 128, %s109, [#allocation4]
    $region21: #{tpu_custom_call.1} parent=1 // pred_fallthru
      _
    // Predicated region
    $region22: #{tpu_custom_call.1} parent=1 // pred_check
      _
    $region23: #{tpu_custom_call.1} parent=1 // pred_check_branch
      %113 = sbr.rel (0) target = $region25
    $region24: #{tpu_custom_call.1} parent=1 // pred_region
      %115 = dma.done [#allocation4], 128
    $region25: #{tpu_custom_call.1} parent=1 // pred_fallthru
      _
    %116 = vsyncpa [#allocation3], 1
    %117 = vsyncpa [#allocation4], 1
    %118 = vsyncpa [#allocation5], 1

</llo_original>
